<compile_context>
chip_gen: v6e
topology: v6e:2x2x1
jax: 0.10.0
libtpu: 0.0.40
codegen_flags: <defaults>
</compile_context>

<pallas_src>
import math
from functools import partial

import jax
import jax.numpy as jnp
from jax import lax
from jax.experimental import pallas as pl
from jax.experimental.pallas import tpu as pltpu

F32 = jnp.float32
BF16 = jnp.bfloat16
_EPS_BN = 1e-5
_LANE = 128


def _round_up(x, m):
    return (x + m - 1) // m * m


class SInt(int):
    """Static int: registered as a leafless pytree node so layer metadata stays
    a Python int (not a tracer) when the whole forward is wrapped in jax.jit."""


jax.tree_util.register_pytree_node(
    SInt, lambda x: ((), int(x)), lambda aux, _: SInt(aux))


# ---------------------------------------------------------------------------
# Pallas kernels
# ---------------------------------------------------------------------------
def _mm_kernel(a_ref, b_ref, s_ref, c_ref, o_ref, acc_ref, *, relu):
    """bf16 x bf16 -> f32 matmul with fused per-column scale/bias(/ReLU)."""
    @pl.when(pl.program_id(2) == 0)
    def _():
        acc_ref[...] = jnp.zeros_like(acc_ref)

    acc_ref[...] += jnp.dot(a_ref[...], b_ref[...],
                            preferred_element_type=jnp.float32)

    @pl.when(pl.program_id(2) == pl.num_programs(2) - 1)
    def _():
        y = acc_ref[...] * s_ref[...] + c_ref[...]
        if relu:
            y = jnp.maximum(y, 0.0)
        o_ref[...] = y


def _attn_kernel(q_ref, k_ref, v_ref, o_ref):
    """Single-head scaled-dot-product attention over one batch block (eval)."""
    E = q_ref.shape[-1]
    q = q_ref[...].astype(BF16)
    k = k_ref[...].astype(BF16)
    s = jnp.einsum('bse,bte->bst', q, k,
                   preferred_element_type=jnp.float32) * (1.0 / math.sqrt(E))
    m = jnp.max(s, axis=-1, keepdims=True)
    p = jnp.exp(s - m)
    p = p * pl.reciprocal(jnp.sum(p, axis=-1, keepdims=True), approx=True)
    o_ref[...] = jnp.einsum('bst,bte->bse', p.astype(BF16),
                            v_ref[...].astype(BF16),
                            preferred_element_type=jnp.float32)


def _layernorm_kernel(x_ref, g_ref, b_ref, o_ref):
    x = x_ref[...]
    mu = jnp.mean(x, axis=-1, keepdims=True)
    xc = x - mu
    var = jnp.mean(xc * xc, axis=-1, keepdims=True)
    o_ref[...] = xc * lax.rsqrt(var + 1e-5) * g_ref[...] + b_ref[...]


def _corr_max_kernel(x_ref, v_ref, s_ref, i_ref):
    # x, v in (b, L, c): t[b, i, j] = sum_c x[b, i, c] * v[b, j, c]
    t = jnp.einsum('bic,bjc->bij', x_ref[...].astype(BF16),
                   v_ref[...].astype(BF16),
                   preferred_element_type=jnp.float32)
    mx = jnp.max(t, axis=1)
    # first-occurrence argmax kept as iota/where/min (robust Mosaic lowering).
    iota = lax.broadcasted_iota(jnp.int32, t.shape, 1)
    sel = jnp.where(t >= mx[:, None, :], iota, jnp.int32(t.shape[1]))
    s_ref[...] = mx
    i_ref[...] = jnp.min(sel, axis=1)


def _mda_fuse_kernel(o1_ref, o2_ref, o3_ref, r_ref, out_ref):
    o1, o2, o3 = o1_ref[...], o2_ref[...], o3_ref[...]
    m = jnp.maximum(jnp.maximum(o1, o2), o3)
    denom = jnp.exp(o1 - m) + jnp.exp(o2 - m) + jnp.exp(o3 - m)
    # max_i softmax([o1, o2, o3])_i == 1/denom ; then relu(rgb + fusion)
    out_ref[...] = jnp.maximum(
        r_ref[...] + pl.reciprocal(denom, approx=True), 0.0)


# ---------------------------------------------------------------------------
# Pallas wrappers
# ---------------------------------------------------------------------------
def _choose_tiles(M, Kp, Np):
    Mp = _round_up(M, 8)
    if Mp > 256:
        tm, Mp = 256, _round_up(M, 256)
    else:
        tm = Mp
    if Kp % 512 == 0:
        tk = 512
    elif Kp % 256 == 0:
        tk = 256
    else:
        tk = 128
    tn = None
    for t in (512, 256, 128):          # prefer >=2 N blocks (v7x megacore)
        if Np % t == 0 and Np // t >= 2:
            tn = t
            break
    if tn is None:
        tn = min(Np, 512)
    return tm, tk, tn, Mp


@partial(jax.jit, static_argnames=("relu", "n_out"))
def _matmul_prepped(a, wm, scale, bias, relu, n_out):
    """out = act((a @ wm) * scale + bias)[:, :n_out]; wm is pre-padded bf16."""
    M, K = a.shape
    Kp, Np = wm.shape
    tm, tk, tn, Mp = _choose_tiles(M, Kp, Np)
    a_p = a.astype(BF16)
    if (Mp, Kp) != (M, K):
        a_p = jnp.pad(a_p, ((0, Mp - M), (0, Kp - K)))
    out = pl.pallas_call(
        partial(_mm_kernel, relu=relu),
        out_shape=jax.ShapeDtypeStruct((Mp, Np), F32),
        grid_spec=pltpu.PrefetchScalarGridSpec(
            num_scalar_prefetch=0,
            grid=(Mp // tm, Np // tn, Kp // tk),
            in_specs=[pl.BlockSpec((tm, tk), lambda i, j, k: (i, k)),
                      pl.BlockSpec((tk, tn), lambda i, j, k: (k, j)),
                      pl.BlockSpec((1, tn), lambda i, j, k: (0, j)),
                      pl.BlockSpec((1, tn), lambda i, j, k: (0, j))],
            out_specs=pl.BlockSpec((tm, tn), lambda i, j, k: (i, j)),
            scratch_shapes=[pltpu.VMEM((tm, tn), F32)]),
        compiler_params=pltpu.CompilerParams(
            dimension_semantics=("parallel", "parallel", "arbitrary")),
    )(a_p, wm, scale, bias)
    if (M, int(n_out)) != (Mp, Np):
        out = out[:M, :n_out]
    return out


def dense(a2d, cp, relu=False):
    return _matmul_prepped(a2d, cp['wm'], cp['s'], cp['b'],
                           relu=relu, n_out=cp['cout'])


@jax.jit
def attn_core(q, k, v):
    # q, k, v: (Nb, S, E); batched single-head attention, grid over Nb blocks.
    Nb, S, E = q.shape
    bb = 8 if Nb % 8 == 0 else Nb
    spec = pl.BlockSpec((bb, S, E), lambda i: (i, 0, 0))
    return pl.pallas_call(
        _attn_kernel,
        out_shape=jax.ShapeDtypeStruct((Nb, S, E), F32),
        grid=(Nb // bb,),
        in_specs=[spec, spec, spec],
        out_specs=spec,
        compiler_params=pltpu.CompilerParams(
            dimension_semantics=("parallel",)),
    )(q, k, v)


@jax.jit
def layer_norm(x, g, b):
    R, E = x.shape
    return pl.pallas_call(
        _layernorm_kernel,
        out_shape=jax.ShapeDtypeStruct((R, E), F32),
        grid=(1,),
        in_specs=[pl.BlockSpec((R, E), lambda i: (0, 0)),
                  pl.BlockSpec((1, E), lambda i: (0, 0)),
                  pl.BlockSpec((1, E), lambda i: (0, 0))],
        out_specs=pl.BlockSpec((R, E), lambda i: (0, 0)),
    )(x, g.reshape(1, E), b.reshape(1, E))


@jax.jit
def corr_max(x_blc, v_blc):
    """x, v: (b, L, c). Returns max over i of <x[:,i,:], v[:,j,:]> and argmax_i."""
    b, L, c = x_blc.shape
    spec3 = pl.BlockSpec((b, L, c), lambda i: (0, 0, 0))
    spec2 = pl.BlockSpec((b, L), lambda i: (0, 0))
    return pl.pallas_call(
        _corr_max_kernel,
        out_shape=(jax.ShapeDtypeStruct((b, L), F32),
                   jax.ShapeDtypeStruct((b, L), jnp.int32)),
        grid=(1,),
        in_specs=[spec3, spec3],
        out_specs=(spec2, spec2),
    )(x_blc, v_blc)


@jax.jit
def mda_fuse(o1, o2, o3, rgb):
    """relu(rgb + max(softmax over stacked [o1, o2, o3])) in a lane-dense layout."""
    shape = o1.shape
    n = o1.size
    np_ = _round_up(n, 8 * _LANE)

    def flat(x):
        x = x.reshape(-1)
        if np_ != n:
            x = jnp.pad(x, (0, np_ - n))
        return x.reshape(np_ // _LANE, _LANE)

    R = np_ // _LANE
    spec = pl.BlockSpec((R, _LANE), lambda i: (0, 0))
    out = pl.pallas_call(
        _mda_fuse_kernel,
        out_shape=jax.ShapeDtypeStruct((R, _LANE), F32),
        grid=(1,),
        in_specs=[spec] * 4,
        out_specs=spec,
    )(flat(o1), flat(o2), flat(o3), flat(rgb))
    return out.reshape(-1)[:n].reshape(shape)


# ---------------------------------------------------------------------------
# NHWC glue (im2col, pooling, upsampling); compute stays in Pallas
# ---------------------------------------------------------------------------
def conv_nhwc(x, cp, relu):
    """Conv2d (1x1, or 3x3/pad=1, stride 1) + folded BN/bias (+ReLU), NHWC."""
    B, H, W, C = x.shape
    if cp['k'] == 1:
        a = x.reshape(B * H * W, C)
    else:
        xp = jnp.pad(x, ((0, 0), (1, 1), (1, 1), (0, 0)))
        a = jnp.concatenate(
            [xp[:, dh:dh + H, dw:dw + W, :]
             for dh in range(3) for dw in range(3)], axis=-1)
        a = a.reshape(B * H * W, 9 * C)
    y = dense(a, cp, relu=relu)
    return y.reshape(B, H, W, int(cp['cout']))


def max_pool2(x):                      # MaxPool2d(kernel=2, stride=2), NHWC
    B, H, W, C = x.shape
    return x.reshape(B, H // 2, 2, W // 2, 2, C).max(axis=(2, 4))


def upsample_bilinear(x, scale):       # nn.Upsample(bilinear, align_corners=True)
    B, H, W, C = x.shape
    Ho, Wo = H * scale, W * scale

    def coords(n_in, n_out):
        if n_in == 1:
            z = jnp.zeros((n_out,), F32)
            zi = jnp.zeros((n_out,), jnp.int32)
            return z, zi, zi
        src = jnp.arange(n_out) * (n_in - 1) / (n_out - 1)
        i0 = jnp.clip(jnp.floor(src).astype(jnp.int32), 0, n_in - 2)
        return (src - i0).astype(F32), i0, i0 + 1

    fh, h0, h1 = coords(H, Ho)
    fw, w0, w1 = coords(W, Wo)
    x00 = x[:, h0][:, :, w0]
    x01 = x[:, h0][:, :, w1]
    x10 = x[:, h1][:, :, w0]
    x11 = x[:, h1][:, :, w1]
    fh_ = fh[None, :, None, None]
    fw_ = fw[None, None, :, None]
    top = x00 * (1 - fw_) + x01 * fw_
    bot = x10 * (1 - fw_) + x11 * fw_
    return top * (1 - fh_) + bot * fh_


# ---------------------------------------------------------------------------
# Parameter preparation (weights pre-padded / pre-transposed / bf16 once)
# ---------------------------------------------------------------------------
def _prep_conv(w, conv_bias=None, gamma=None, beta=None):
    """Fold Conv2d (+ eval BatchNorm) into a pre-padded bf16 matmul weight and
    f32 per-output-channel scale/bias epilogue vectors."""
    cout, cin, kh, kw = w.shape
    K = cin * kh * kw
    if gamma is not None:
        # BatchNorm2d (eval): running_mean=0, running_var=1.
        scale = gamma / jnp.sqrt(1.0 + _EPS_BN)
        bias = beta if conv_bias is None else beta + conv_bias * scale
    else:
        scale = jnp.ones((cout,), F32)
        bias = conv_bias if conv_bias is not None else jnp.zeros((cout,), F32)
    wm = w.transpose(2, 3, 1, 0).reshape(K, cout)     # rows ordered (kh, kw, cin)
    Kp = _round_up(K, 512) if K >= 1024 else _round_up(K, _LANE)
    Np = _round_up(cout, _LANE)
    wm_p = jnp.zeros((Kp, Np), BF16).at[:K, :cout].set(wm.astype(BF16))
    s_p = jnp.zeros((1, Np), F32).at[0, :cout].set(scale)
    b_p = jnp.zeros((1, Np), F32).at[0, :cout].set(bias)
    return {'wm': wm_p, 's': s_p, 'b': b_p, 'cout': SInt(cout), 'k': SInt(kh)}


def _prep_dense(w, b):
    """y = x @ w.T + b; w: (out, in).  Pre-padded bf16."""
    out_dim, in_dim = w.shape
    Kp = _round_up(in_dim, 512) if in_dim >= 1024 else _round_up(in_dim, _LANE)
    Np = _round_up(out_dim, _LANE)
    wm = jnp.zeros((Kp, Np), BF16).at[:in_dim, :out_dim].set(w.T.astype(BF16))
    s = jnp.zeros((1, Np), F32).at[0, :out_dim].set(1.0)
    bb = jnp.zeros((1, Np), F32).at[0, :out_dim].set(b)
    return {'wm': wm, 's': s, 'b': bb, 'cout': SInt(out_dim), 'k': SInt(1)}


class ParamGen:
    def __init__(self, key):
        self._key = key

    def take(self, shape, scale=0.02):
        self._key, sub = jax.random.split(self._key)
        return scale * jax.random.normal(sub, shape, dtype=F32)


def init_basic(pg, cin, cout, k):      # BasicConv2d: conv(no bias) + BN + ReLU
    return _prep_conv(pg.take((cout, cin, k, k)),
                      gamma=1.0 + pg.take((cout,), 0.05),
                      beta=pg.take((cout,), 0.05))


def init_conv(pg, cin, cout, k):       # plain Conv2d with bias
    return _prep_conv(pg.take((cout, cin, k, k)),
                      conv_bias=pg.take((cout,), 0.05))


def init_conv_bn(pg, cin, cout, k):    # Conv2d(bias) + BN (Attention_block.conv2)
    return _prep_conv(pg.take((cout, cin, k, k)),
                      conv_bias=pg.take((cout,), 0.05),
                      gamma=1.0 + pg.take((cout,), 0.05),
                      beta=pg.take((cout,), 0.05))


def init_mha(pg, e):
    in_w = pg.take((3 * e, e))
    in_b = pg.take((3 * e,), 0.05)
    out_w = pg.take((e, e))
    out_b = pg.take((e,), 0.05)
    wq, wk, wv = in_w[:e], in_w[e:2 * e], in_w[2 * e:]
    bq, bk, bv = in_b[:e], in_b[e:2 * e], in_b[2 * e:]
    # query == value in ATFNet, so [Wq | Wv] is fused into one projection.
    return {'qv': _prep_dense(jnp.concatenate([wq, wv], 0),
                              jnp.concatenate([bq, bv], 0)),
            'k': _prep_dense(wk, bk),
            'out': _prep_dense(out_w, out_b)}


def init_ln(pg, e):
    return {'g': jnp.ones((e,), F32), 'b': jnp.zeros((e,), F32)}


def init_attention_block(pg, c):
    return {'conv1': init_conv(pg, 2 * c, c, 1),
            'conv2': init_conv_bn(pg, 3 * c, c, 3)}


def init_mda(pg, c):
    return {'t1': init_attention_block(pg, c),
            't2': init_attention_block(pg, c),
            't3': init_attention_block(pg, c)}


def init_mea0(pg, in_dim, out_dim):
    return {'l10': init_conv(pg, out_dim, out_dim, 1),
            'attn': init_mha(pg, in_dim),
            'ln': init_ln(pg, out_dim)}


def init_mea(pg, in_dim, out_dim):
    return {'r1': init_basic(pg, in_dim, out_dim, 1),
            'r2': init_basic(pg, in_dim, out_dim, 1),
            'r3': init_basic(pg, in_dim, out_dim, 1),
            'attn': init_mha(pg, out_dim),
            'ln': init_ln(pg, out_dim),
            'f1': init_basic(pg, out_dim * 2, out_dim, 3),
            'f2': init_basic(pg, out_dim + out_dim // 2, out_dim, 3)}


def init_backbone(pg):
    # TODO(synk): Res2Net_model is not provided in the reference; replaced with a
    # deterministic synthetic conv pyramid producing the channel counts / strides
    # the ATFNet decoder expects (64, 256, 512, 1024, 2048 at /4, /4, /8, /16, /32).
    return {'c0': init_conv(pg, 3, 64, 1),
            'c1': init_conv(pg, 64, 256, 1),
            'c2': init_conv(pg, 256, 512, 1),
            'c3': init_conv(pg, 512, 1024, 1),
            'c4': init_conv(pg, 1024, 2048, 1)}


def init_atfnet(pg, channel=32):
    p = {'bb_rgb': init_backbone(pg),
         'bb_dep': init_backbone(pg),
         'bb_flo': init_backbone(pg),
         'layer_dep0': init_conv(pg, 1, 3, 1),
         'mea_0': init_mea0(pg, 64, 64),
         'mea_1': init_mea(pg, 256, 128),
         'mea_2': init_mea(pg, 512, 256),
         'mea_3': init_mea(pg, 1024, 512),
         'mea_4': init_mea(pg, 2048, 1024)}
    enc_cins = (2048, 1024 + 32, 512 + 32, 256 + 32, 64 + 32)
    ful_cins = (1024, 512 + 32, 256 + 32, 128 + 32, 64 + 32)
    for name, cins in (('rgb', enc_cins), ('dep', enc_cins),
                       ('flo', enc_cins), ('ful', ful_cins)):
        for lvl, cin in zip((4, 3, 2, 1, 0), cins):
            p[f'{name}_gcm_{lvl}'] = init_basic(pg, cin, channel, 1)
        p[f'{name}_conv_out'] = init_conv(pg, channel, 1, 1)
    for lvl in (3, 2, 1, 0):
        p[f'mda_{lvl}'] = init_mda(pg, channel)
    return p


# ---------------------------------------------------------------------------
# Module forwards
# ---------------------------------------------------------------------------
def multihead_attention(p, qv_in, k_in):
    """torch nn.MultiheadAttention(E, num_heads=1), eval, with query == value
    (the only way ATFNet uses it).  Inputs are seq-first (S, Nb, E)."""
    S, Nb, E = qv_in.shape
    qv = dense(qv_in.reshape(S * Nb, E), p['qv'])        # fused [q | v] projection
    k = dense(k_in.reshape(S * Nb, E), p['k'])
    q = qv[:, :E].reshape(S, Nb, E).transpose(1, 0, 2)   # (Nb, S, E)
    v = qv[:, E:].reshape(S, Nb, E).transpose(1, 0, 2)
    kb = k.reshape(S, Nb, E).transpose(1, 0, 2)
    o = attn_core(q, kb, v)                              # (Nb, S, E)
    o = o.transpose(1, 0, 2).reshape(S * Nb, E)
    o = dense(o, p['out'])
    return o.reshape(S, Nb, E)


def attention_block(p, V, K, Q):
    b, H, W, c = Q.shape
    L = H * W
    Q1 = Q.reshape(b, L, c)        # torch flatten(2) data, kept channels-last
    K1 = K.reshape(b, L, c)
    V1 = V.reshape(b, L, c)

    def branch(X1):
        s, arg = corr_max(X1, V1)                        # (b, L), (b, L)
        idx = jnp.broadcast_to(arg[:, :, None], (b, L, c))
        ta = jnp.take_along_axis(X1, idx, axis=1).reshape(b, H, W, c)
        cc = conv_nhwc(jnp.concatenate([V, ta], axis=-1), p['conv1'], relu=False)
        return cc * s.reshape(b, H, W, 1)

    C_v = branch(Q1)
    C_k = branch(K1)
    return conv_nhwc(jnp.concatenate([C_v, C_k, V], axis=-1),
                     p['conv2'], relu=True)


def mda(p, x_ful, rgb, dep, flo):
    out1 = attention_block(p['t1'], x_ful, rgb, dep)
    out2 = attention_block(p['t2'], x_ful, rgb, flo)
    out3 = attention_block(p['t3'], rgb, dep, flo)
    return mda_fuse(out1, out2, out3, rgb)


def _torch_view_bchw_to_nhwc(a_flat, b, c, H, W):
    """Replicate torch `x.view(b, c, w, h)` applied to a contiguous (b, L, c)
    tensor, returning the NHWC equivalent of that (layout-punned) NCHW view."""
    return a_flat.reshape(b, c, H, W).transpose(0, 2, 3, 1)


def mea0(p, rgb, depth, flow):
    rgb_proj = conv_nhwc(rgb, p['l10'], relu=False)
    b, H, W, c = rgb.shape
    L = H * W
    dep_w = depth.reshape(b, L, c)        # == torch flatten(2).transpose(1, 2)
    flo_w = flow.reshape(b, L, c)
    a = multihead_attention(p['attn'], dep_w, flo_w)     # (b, L, c)
    a = layer_norm(a.reshape(b * L, c), p['ln']['g'], p['ln']['b'])
    a = _torch_view_bchw_to_nhwc(a, b, c, H, W)
    return rgb_proj + a


def mea(p, rgb, depth, flow, xx):
    x_rgb = conv_nhwc(rgb, p['r1'], relu=True)
    x_dep = conv_nhwc(depth, p['r2'], relu=True)
    x_flo = conv_nhwc(flow, p['r3'], relu=True)
    b, H, W, c = x_rgb.shape
    L = H * W
    dep_w = x_dep.reshape(b, L, c)
    flo_w = x_flo.reshape(b, L, c)
    x11 = multihead_attention(p['attn'], dep_w, flo_w)
    x11 = layer_norm(x11.reshape(b * L, c), p['ln']['g'], p['ln']['b'])
    x11 = _torch_view_bchw_to_nhwc(x11, b, c, H, W)
    y0 = jnp.maximum(x_dep, x11)
    ful_out = jnp.concatenate([x_rgb, x_rgb * y0], axis=-1)
    out1 = conv_nhwc(ful_out, p['f1'], relu=True)
    out2 = conv_nhwc(jnp.concatenate([out1, xx], axis=-1), p['f2'], relu=True)
    return out2


def backbone(p, x):
    x = max_pool2(max_pool2(x))                          # stride 4
    f0 = conv_nhwc(x, p['c0'], relu=True)                # 64   @ /4
    f1 = conv_nhwc(f0, p['c1'], relu=True)               # 256  @ /4
    f2 = conv_nhwc(max_pool2(f1), p['c2'], relu=True)    # 512  @ /8
    f3 = conv_nhwc(max_pool2(f2), p['c3'], relu=True)    # 1024 @ /16
    f4 = conv_nhwc(max_pool2(f3), p['c4'], relu=True)    # 2048 @ /32
    return f0, f1, f2, f3, f4


@jax.jit
def atfnet_forward(p, imgs, depths, flows):
    # Public interface is NCHW (PyTorch); internally everything is NHWC.
    to_nhwc = lambda t: t.transpose(0, 2, 3, 1)
    to_nchw = lambda t: t.transpose(0, 3, 1, 2)
    imgs, depths, flows = to_nhwc(imgs), to_nhwc(depths), to_nhwc(flows)

    img_0, img_1, img_2, img_3, img_4 = backbone(p['bb_rgb'], imgs)
    dep_in = conv_nhwc(depths, p['layer_dep0'], relu=False)
    dep_0, dep_1, dep_2, dep_3, dep_4 = backbone(p['bb_dep'], dep_in)
    flo_0, flo_1, flo_2, flo_3, flo_4 = backbone(p['bb_flo'], flows)

    ful_0 = mea0(p['mea_0'], img_0, dep_0, flo_0)
    ful_1 = mea(p['mea_1'], img_1, dep_1, flo_1, ful_0)
    ful_2 = mea(p['mea_2'], img_2, dep_2, flo_2, max_pool2(ful_1))
    ful_3 = mea(p['mea_3'], img_3, dep_3, flo_3, max_pool2(ful_2))
    ful_4 = mea(p['mea_4'], img_4, dep_4, flo_4, max_pool2(ful_3))

    def decode(prefix, f0, f1, f2, f3, f4):
        x4 = conv_nhwc(f4, p[f'{prefix}_gcm_4'], relu=True)
        x3 = conv_nhwc(jnp.concatenate([f3, upsample_bilinear(x4, 2)], -1),
                       p[f'{prefix}_gcm_3'], relu=True)
        x2 = conv_nhwc(jnp.concatenate([f2, upsample_bilinear(x3, 2)], -1),
                       p[f'{prefix}_gcm_2'], relu=True)
        x1 = conv_nhwc(jnp.concatenate([f1, upsample_bilinear(x2, 2)], -1),
                       p[f'{prefix}_gcm_1'], relu=True)
        x0 = conv_nhwc(jnp.concatenate([f0, x1], -1),
                       p[f'{prefix}_gcm_0'], relu=True)
        out = upsample_bilinear(
            conv_nhwc(x0, p[f'{prefix}_conv_out'], relu=False), 4)
        return out, (x4, x3, x2, x1)

    rgb_out, (x_rgb_42, x_rgb_32, x_rgb_22, x_rgb_12) = decode(
        'rgb', img_0, img_1, img_2, img_3, img_4)
    dep_out, (x_dep_42, x_dep_32, x_dep_22, x_dep_12) = decode(
        'dep', dep_0, dep_1, dep_2, dep_3, dep_4)
    flo_out, (x_flo_42, x_flo_32, x_flo_22, x_flo_12) = decode(
        'flo', flo_0, flo_1, flo_2, flo_3, flo_4)

    x_ful_42 = conv_nhwc(ful_4, p['ful_gcm_4'], relu=True)
    x_ful_32 = conv_nhwc(jnp.concatenate(
        [ful_3, upsample_bilinear(
            mda(p['mda_3'], x_ful_42, x_rgb_42, x_flo_42, x_dep_42), 2)], -1),
        p['ful_gcm_3'], relu=True)
    x_ful_22 = conv_nhwc(jnp.concatenate(
        [ful_2, upsample_bilinear(
            mda(p['mda_2'], x_ful_32, x_rgb_32, x_flo_32, x_dep_32), 2)], -1),
        p['ful_gcm_2'], relu=True)
    x_ful_12 = conv_nhwc(jnp.concatenate(
        [ful_1, upsample_bilinear(
            mda(p['mda_1'], x_ful_22, x_rgb_22, x_flo_22, x_dep_22), 2)], -1),
        p['ful_gcm_1'], relu=True)
    x_ful_02 = conv_nhwc(jnp.concatenate(
        [ful_0, mda(p['mda_0'], x_ful_12, x_rgb_12, x_flo_12, x_dep_12)], -1),
        p['ful_gcm_0'], relu=True)
    ful_out = upsample_bilinear(
        conv_nhwc(x_ful_02, p['ful_conv_out'], relu=False), 4)
    return (to_nchw(rgb_out), to_nchw(dep_out),
            to_nchw(flo_out), to_nchw(ful_out))


# ---------------------------------------------------------------------------
if __name__ == "__main__":
    key = jax.random.PRNGKey(0)
    k_img, k_dep, k_flo, k_par = jax.random.split(key, 4)
    B, H, W = 2, 32, 32                       # H, W must be multiples of 32
    imgs = jax.random.normal(k_img, (B, 3, H, W), F32)
    depths = jax.random.normal(k_dep, (B, 1, H, W), F32)
    flows = jax.random.normal(k_flo, (B, 3, H, W), F32)

    params = init_atfnet(ParamGen(k_par))
    outs = jax.block_until_ready(atfnet_forward(params, imgs, depths, flows))

    for o in outs:
        assert o.shape == (B, 1, H, W)
        assert bool(jnp.all(jnp.isfinite(o)))
    print("KERNEL_OK")
</pallas_src>

<mosaic_0001>
module attributes {stable_mosaic.version = 11 : i64} {
  func.func @_mm_kernel(%arg0: i32, %arg1: i32, %arg2: i32, %arg3: memref<128x128xbf16, #tpu.memory_space<vmem>>, %arg4: memref<128x128xbf16, #tpu.memory_space<vmem>>, %arg5: memref<1x128xf32, #tpu.memory_space<vmem>>, %arg6: memref<1x128xf32, #tpu.memory_space<vmem>>, %arg7: memref<128x128xf32, #tpu.memory_space<vmem>>, %arg8: memref<128x128xf32, #tpu.memory_space<vmem>>) attributes {dimension_semantics = [#tpu.dimension_semantics<parallel>, #tpu.dimension_semantics<parallel>, #tpu.dimension_semantics<arbitrary>], iteration_bounds = array<i64: 1, 1, 1>, scalar_prefetch = 0 : i64, scratch_operands = 1 : i64, tpu.core_type = #tpu.core_type<tc>, window_params = [{transform_indices = @transform_0, window_bounds = array<i64: 128, 128>}, {transform_indices = @transform_1, window_bounds = array<i64: 128, 128>}, {transform_indices = @transform_2, window_bounds = array<i64: 1, 128>}, {transform_indices = @transform_3, window_bounds = array<i64: 1, 128>}, {transform_indices = @transform_4, window_bounds = array<i64: 128, 128>}]} {
    %c0_i32 = arith.constant 0 : i32
    %0 = arith.cmpi eq, %arg2, %c0_i32 : i32
    %1 = arith.extui %0 : i1 to i32
    %c0_i32_0 = arith.constant 0 : i32
    %2 = arith.cmpi ne, %1, %c0_i32_0 : i32
    scf.if %2 {
      %cst_10 = arith.constant 0.000000e+00 : f32
      %12 = vector.broadcast %cst_10 : f32 to vector<128x128xf32>
      %c0_11 = arith.constant 0 : index
      %c0_12 = arith.constant 0 : index
      %13 = vector.load %arg8[%c0_11, %c0_12] : memref<128x128xf32, #tpu.memory_space<vmem>>, vector<128x128xf32>
      tpu.vector_store %arg8[%c0_11, %c0_12], %12 {strides = array<i32>} : memref<128x128xf32, #tpu.memory_space<vmem>>, vector<128x128xf32>,
    } else {
    }
    %c0 = arith.constant 0 : index
    %c0_1 = arith.constant 0 : index
    %3 = vector.load %arg8[%c0, %c0_1] : memref<128x128xf32, #tpu.memory_space<vmem>>, vector<128x128xf32>
    %c0_2 = arith.constant 0 : index
    %c0_3 = arith.constant 0 : index
    %4 = vector.load %arg3[%c0_2, %c0_3] : memref<128x128xbf16, #tpu.memory_space<vmem>>, vector<128x128xbf16>
    %c0_4 = arith.constant 0 : index
    %c0_5 = arith.constant 0 : index
    %5 = vector.load %arg4[%c0_4, %c0_5] : memref<128x128xbf16, #tpu.memory_space<vmem>>, vector<128x128xbf16>
    %cst = arith.constant dense<0.000000e+00> : vector<128x128xf32>
    %6 = tpu.matmul %4, %5, %cst {dimension_numbers = #tpu.dot_dimension_numbers<[1], [0], [0], [1], [0, 0, 1, 1], [], []>} : vector<128x128xbf16>, vector<128x128xbf16>, vector<128x128xf32> -> vector<128x128xf32>
    %7 = arith.addf %3, %6 : vector<128x128xf32>
    %c0_6 = arith.constant 0 : index
    %c0_7 = arith.constant 0 : index
    %8 = vector.load %arg8[%c0_6, %c0_7] : memref<128x128xf32, #tpu.memory_space<vmem>>, vector<128x128xf32>
    tpu.vector_store %arg8[%c0_6, %c0_7], %7 {strides = array<i32>} : memref<128x128xf32, #tpu.memory_space<vmem>>, vector<128x128xf32>,
    %c0_i32_8 = arith.constant 0 : i32
    %9 = arith.cmpi eq, %arg2, %c0_i32_8 : i32
    %10 = arith.extui %9 : i1 to i32
    %c0_i32_9 = arith.constant 0 : i32
    %11 = arith.cmpi ne, %10, %c0_i32_9 : i32
    scf.if %11 {
      %c0_10 = arith.constant 0 : index
      %c0_11 = arith.constant 0 : index
      %12 = vector.load %arg8[%c0_10, %c0_11] : memref<128x128xf32, #tpu.memory_space<vmem>>, vector<128x128xf32>
      %c0_12 = arith.constant 0 : index
      %c0_13 = arith.constant 0 : index
      %13 = vector.load %arg5[%c0_12, %c0_13] : memref<1x128xf32, #tpu.memory_space<vmem>>, vector<1x128xf32>
      %14 = vector.broadcast %13 : vector<1x128xf32> to vector<128x128xf32>
      %15 = arith.mulf %12, %14 : vector<128x128xf32>
      %c0_14 = arith.constant 0 : index
      %c0_15 = arith.constant 0 : index
      %16 = vector.load %arg6[%c0_14, %c0_15] : memref<1x128xf32, #tpu.memory_space<vmem>>, vector<1x128xf32>
      %17 = vector.broadcast %16 : vector<1x128xf32> to vector<128x128xf32>
      %18 = arith.addf %15, %17 : vector<128x128xf32>
      %cst_16 = arith.constant 0.000000e+00 : f32
      %19 = vector.broadcast %cst_16 : f32 to vector<128x128xf32>
      %20 = arith.maximumf %18, %19 : vector<128x128xf32>
      %c0_17 = arith.constant 0 : index
      %c0_18 = arith.constant 0 : index
      %21 = vector.load %arg7[%c0_17, %c0_18] : memref<128x128xf32, #tpu.memory_space<vmem>>, vector<128x128xf32>
      tpu.vector_store %arg7[%c0_17, %c0_18], %20 {strides = array<i32>} : memref<128x128xf32, #tpu.memory_space<vmem>>, vector<128x128xf32>,
    } else {
    }
    return
  }
  func.func @transform_0(%arg0: i32, %arg1: i32, %arg2: i32) -> (i32, i32) {
    %c0_i32 = arith.constant 0 : i32
    return %arg0, %arg2 : i32, i32
  }
  func.func @transform_1(%arg0: i32, %arg1: i32, %arg2: i32) -> (i32, i32) {
    %c0_i32 = arith.constant 0 : i32
    return %arg2, %arg1 : i32, i32
  }
  func.func @transform_2(%arg0: i32, %arg1: i32, %arg2: i32) -> (i32, i32) {
    %c0_i32 = arith.constant 0 : i32
    %c0_i32_0 = arith.constant 0 : i32
    return %c0_i32, %arg1 : i32, i32
  }
  func.func @transform_3(%arg0: i32, %arg1: i32, %arg2: i32) -> (i32, i32) {
    %c0_i32 = arith.constant 0 : i32
    %c0_i32_0 = arith.constant 0 : i32
    return %c0_i32, %arg1 : i32, i32
  }
  func.func @transform_4(%arg0: i32, %arg1: i32, %arg2: i32) -> (i32, i32) {
    %c0_i32 = arith.constant 0 : i32
    return %arg0, %arg1 : i32, i32
  }
}

</mosaic_0001>

<llo_original>
// kernel: _matmul_prepped.1
$region0: #{_matmul_prepped.1}
  #allocation0 [shape = 'u32[]', space=smem, size = 0x4, offset = 0x4, fixed_abs, tag = 'smem constant byte address 0x4 - core index']
  #allocation1 [shape = 'u32[144,128]{1,0:T(1,128)}', space=vmem, size = 0x12000, scoped, tag = 'internal scratch']
  #allocation2 [shape = 'f32[128,128]{1,0:T(8,128)}', space=vmem, size = 0x10000, scoped, tag = 'scratch operand']
  %s0 = inlined_call_operand.vmem [shape: bf16[128,128], index: 0, kind: input, shape index: {}]
  %s1 = inlined_call_operand.vmem [shape: bf16[128,128], index: 1, kind: input, shape index: {}]
  %s2 = inlined_call_operand.vmem [shape: f32[1,128], index: 2, kind: input, shape index: {}]
  %s3 = inlined_call_operand.vmem [shape: f32[1,128], index: 3, kind: input, shape index: {}]
  %s4 = inlined_call_operand.vmem [shape: f32[128,128], index: 4, kind: output, shape index: {}]
  %s5 = sld [smem:[#allocation0]]
  $region34: #{_matmul_prepped.1} parent=0
    _
  %s7 = ssub.s32 1, %s5
  %s8 = scalar_select 0, %s7, %s5
  // Predicated region
  $region2: #{_matmul_prepped.1} parent=0 // pred_check
    _
  $region3: #{_matmul_prepped.1} parent=0 // pred_check_branch
    %10 = sbr.rel (0) target = $region5
  $region4: #{_matmul_prepped.1} parent=0 // pred_region
    _
  $region5: #{_matmul_prepped.1} parent=0 // pred_fallthru
    _
  // Predicated region
  $region6: #{_matmul_prepped.1} parent=0 // pred_check
    _
  $region7: #{_matmul_prepped.1} parent=0 // pred_check_branch
    %12 = sbr.rel (0) target = $region9
  $region8: #{_matmul_prepped.1} parent=0 // pred_region
    _
  $region9: #{_matmul_prepped.1} parent=0 // pred_fallthru
    _
  // Predicated region
  $region10: #{_matmul_prepped.1} parent=0 // pred_check
    _
  $region11: #{_matmul_prepped.1} parent=0 // pred_check_branch
    %14 = sbr.rel (0) target = $region13
  $region12: #{_matmul_prepped.1} parent=0 // pred_region
    _
  $region13: #{_matmul_prepped.1} parent=0 // pred_fallthru
    _
  // Predicated region
  $region14: #{_matmul_prepped.1} parent=0 // pred_check
    _
  $region15: #{_matmul_prepped.1} parent=0 // pred_check_branch
    %16 = sbr.rel (0) target = $region17
  $region16: #{_matmul_prepped.1} parent=0 // pred_region
    _
  $region17: #{_matmul_prepped.1} parent=0 // pred_fallthru
    _
  %p18 = scmp.eq.s32.totalorder 0, 0
  // Predicated region
  $region18: #{_matmul_prepped.1} parent=0 // pred_check
    %p19 = pneg %p18
  $region19: #{_matmul_prepped.1} parent=0 // pred_check_branch
    %21 = sbr.rel (%p19) target = $region21
  $region20: #{_matmul_prepped.1} parent=0 // pred_region
    %22 = vst [vmem:[#allocation2] sm:$0xff] 0.0
    %23 = vst [vmem:[#allocation2 + $0x8] sm:$0xff] 0.0
    %24 = vst [vmem:[#allocation2 + $0x10] sm:$0xff] 0.0
    %25 = vst [vmem:[#allocation2 + $0x18] sm:$0xff] 0.0
    %26 = vst [vmem:[#allocation2 + $0x20] sm:$0xff] 0.0
    %27 = vst [vmem:[#allocation2 + $0x28] sm:$0xff] 0.0
    %28 = vst [vmem:[#allocation2 + $0x30] sm:$0xff] 0.0
    %29 = vst [vmem:[#allocation2 + $0x38] sm:$0xff] 0.0
    %30 = vst [vmem:[#allocation2 + $0x40] sm:$0xff] 0.0
    %31 = vst [vmem:[#allocation2 + $0x48] sm:$0xff] 0.0
    %32 = vst [vmem:[#allocation2 + $0x50] sm:$0xff] 0.0
    %33 = vst [vmem:[#allocation2 + $0x58] sm:$0xff] 0.0
    %34 = vst [vmem:[#allocation2 + $0x60] sm:$0xff] 0.0
    %35 = vst [vmem:[#allocation2 + $0x68] sm:$0xff] 0.0
    %36 = vst [vmem:[#allocation2 + $0x70] sm:$0xff] 0.0
    %37 = vst [vmem:[#allocation2 + $0x78] sm:$0xff] 0.0
  $region21: #{_matmul_prepped.1} parent=0 // pred_fallthru
    _
  %v38 = vld [vmem:[#allocation2] sm:$0xff]
  %v39 = vld [vmem:[#allocation2 + $0x8] sm:$0xff]
  %v40 = vld [vmem:[#allocation2 + $0x10] sm:$0xff]
  %v41 = vld [vmem:[#allocation2 + $0x18] sm:$0xff]
  %v42 = vld [vmem:[#allocation2 + $0x20] sm:$0xff]
  %v43 = vld [vmem:[#allocation2 + $0x28] sm:$0xff]
  %v44 = vld [vmem:[#allocation2 + $0x30] sm:$0xff]
  %v45 = vld [vmem:[#allocation2 + $0x38] sm:$0xff]
  %v46 = vld [vmem:[#allocation2 + $0x40] sm:$0xff]
  %v47 = vld [vmem:[#allocation2 + $0x48] sm:$0xff]
  %v48 = vld [vmem:[#allocation2 + $0x50] sm:$0xff]
  %v49 = vld [vmem:[#allocation2 + $0x58] sm:$0xff]
  %v50 = vld [vmem:[#allocation2 + $0x60] sm:$0xff]
  %v51 = vld [vmem:[#allocation2 + $0x68] sm:$0xff]
  %v52 = vld [vmem:[#allocation2 + $0x70] sm:$0xff]
  %v53 = vld [vmem:[#allocation2 + $0x78] sm:$0xff]
  %v54 = vld [vmem:[%s0] sm:$0xf]
  %v55 = vld [vmem:[%s0 + $0x4] sm:$0xf]
  %v56 = vld [vmem:[%s0 + $0x8] sm:$0xf]
  %v57 = vld [vmem:[%s0 + $0xc] sm:$0xf]
  %v58 = vld [vmem:[%s0 + $0x10] sm:$0xf]
  %v59 = vld [vmem:[%s0 + $0x14] sm:$0xf]
  %v60 = vld [vmem:[%s0 + $0x18] sm:$0xf]
  %v61 = vld [vmem:[%s0 + $0x1c] sm:$0xf]
  %v62 = vld [vmem:[%s0 + $0x20] sm:$0xf]
  %v63 = vld [vmem:[%s0 + $0x24] sm:$0xf]
  %v64 = vld [vmem:[%s0 + $0x28] sm:$0xf]
  %v65 = vld [vmem:[%s0 + $0x2c] sm:$0xf]
  %v66 = vld [vmem:[%s0 + $0x30] sm:$0xf]
  %v67 = vld [vmem:[%s0 + $0x34] sm:$0xf]
  %v68 = vld [vmem:[%s0 + $0x38] sm:$0xf]
  %v69 = vld [vmem:[%s0 + $0x3c] sm:$0xf]
  %v70 = vld [vmem:[%s1] sm:$0xf]
  %v71 = vld [vmem:[%s1 + $0x4] sm:$0xf]
  %v72 = vld [vmem:[%s1 + $0x8] sm:$0xf]
  %v73 = vld [vmem:[%s1 + $0xc] sm:$0xf]
  %v74 = vld [vmem:[%s1 + $0x10] sm:$0xf]
  %v75 = vld [vmem:[%s1 + $0x14] sm:$0xf]
  %v76 = vld [vmem:[%s1 + $0x18] sm:$0xf]
  %v77 = vld [vmem:[%s1 + $0x1c] sm:$0xf]
  %v78 = vld [vmem:[%s1 + $0x20] sm:$0xf]
  %v79 = vld [vmem:[%s1 + $0x24] sm:$0xf]
  %v80 = vld [vmem:[%s1 + $0x28] sm:$0xf]
  %v81 = vld [vmem:[%s1 + $0x2c] sm:$0xf]
  %v82 = vld [vmem:[%s1 + $0x30] sm:$0xf]
  %v83 = vld [vmem:[%s1 + $0x34] sm:$0xf]
  %v84 = vld [vmem:[%s1 + $0x38] sm:$0xf]
  %v85 = vld [vmem:[%s1 + $0x3c] sm:$0xf]
  %v102 = vunpack.c.l.b16 %v54
  %v103 = vunpack.c.l.b16 %v55
  %v104 = vunpack.c.l.b16 %v56
  %v105 = vunpack.c.l.b16 %v57
  %v106 = vunpack.c.l.b16 %v58
  %v107 = vunpack.c.l.b16 %v59
  %v108 = vunpack.c.l.b16 %v60
  %v109 = vunpack.c.l.b16 %v61
  %v110 = vunpack.c.l.b16 %v62
  %v111 = vunpack.c.l.b16 %v63
  %v112 = vunpack.c.l.b16 %v64
  %v113 = vunpack.c.l.b16 %v65
  %v114 = vunpack.c.l.b16 %v66
  %v115 = vunpack.c.l.b16 %v67
  %v116 = vunpack.c.l.b16 %v68
  %v117 = vunpack.c.l.b16 %v69
  %v118 = vpack.c.b16 %v103, %v102
  %v119 = vpack.c.b16 %v105, %v104
  %v120 = vpack.c.b16 %v107, %v106
  %v121 = vpack.c.b16 %v109, %v108
  %v122 = vpack.c.b16 %v111, %v110
  %v123 = vpack.c.b16 %v113, %v112
  %v124 = vpack.c.b16 %v115, %v114
  %v125 = vpack.c.b16 %v117, %v116
  %v150 = vunpack.c.l.b16 %v70
  %v151 = vunpack.c.l.b16 %v71
  %v152 = vunpack.c.l.b16 %v72
  %v153 = vunpack.c.l.b16 %v73
  %v154 = vunpack.c.l.b16 %v74
  %v155 = vunpack.c.l.b16 %v75
  %v156 = vunpack.c.l.b16 %v76
  %v157 = vunpack.c.l.b16 %v77
  %v158 = vunpack.c.l.b16 %v78
  %v159 = vunpack.c.l.b16 %v79
  %v160 = vunpack.c.l.b16 %v80
  %v161 = vunpack.c.l.b16 %v81
  %v162 = vunpack.c.l.b16 %v82
  %v163 = vunpack.c.l.b16 %v83
  %v164 = vunpack.c.l.b16 %v84
  %v165 = vunpack.c.l.b16 %v85
  %v166 = vpack.c.b16 %v151, %v150
  %v167 = vpack.c.b16 %v153, %v152
  %v168 = vpack.c.b16 %v155, %v154
  %v169 = vpack.c.b16 %v157, %v156
  %v170 = vpack.c.b16 %v159, %v158
  %v171 = vpack.c.b16 %v161, %v160
  %v172 = vpack.c.b16 %v163, %v162
  %v173 = vpack.c.b16 %v165, %v164
  %182 = vmatprep.subr.bf16.mxu0 0
  %183 = vmatpush1.bf16.msra.mxu0 %v173
  %184 = vmatprep.subr.bf16.mxu0 0
  %185 = vmatpush1.bf16.msra.mxu0 %v172
  %186 = vmatprep.subr.bf16.mxu0 0
  %187 = vmatpush1.bf16.msra.mxu0 %v171
  %188 = vmatprep.subr.bf16.mxu0 0
  %189 = vmatpush1.bf16.msra.mxu0 %v170
  %190 = vmatprep.subr.bf16.mxu0 0
  %191 = vmatpush1.bf16.msra.mxu0 %v169
  %192 = vmatprep.subr.bf16.mxu0 0
  %193 = vmatpush1.bf16.msra.mxu0 %v168
  %194 = vmatprep.subr.bf16.mxu0 0
  %195 = vmatpush1.bf16.msra.mxu0 %v167
  %196 = vmatprep.subr.bf16.mxu0 0
  %197 = vmatpush1.bf16.msra.mxu0 %v166
  %198 = vmatprep.subr.bf16.mxu0 0
  %199 = vmatpush2.bf16.msra.mxu0 0
  %200 = vmatprep.subr.bf16.mxu0 0
  %201 = vmatpush2.bf16.msra.mxu0 0
  %202 = vmatprep.subr.bf16.mxu0 0
  %203 = vmatpush2.bf16.msra.mxu0 0
  %204 = vmatprep.subr.bf16.mxu0 0
  %205 = vmatpush2.bf16.msra.mxu0 0
  %206 = vmatprep.subr.bf16.mxu0 0
  %207 = vmatpush2.bf16.msra.mxu0 0
  %208 = vmatprep.subr.bf16.mxu0 0
  %209 = vmatpush2.bf16.msra.mxu0 0
  %210 = vmatprep.subr.bf16.mxu0 0
  %211 = vmatpush2.bf16.msra.mxu0 0
  %212 = vmatprep.subr.bf16.mxu0 0
  %213 = vmatpush2.bf16.msra.mxu0 0
  %214 = vmatprep.mubr.bf16.mxu0 0
  %215 = vmatmul.mubr.bf16.gmra.mxu0 %v118
  %v216 = vpop.f32.mrf.mxu0
  %v217 = vadd.f32 0.0, %v216
  %v218 = vpop.f32.mrf.mxu0
  %v219 = vpop.f32.mrf.mxu0
  %v220 = vadd.f32 0.0, %v219
  %v221 = vpop.f32.mrf.mxu0
  %222 = vmatprep.mubr.bf16.mxu0 0
  %223 = vmatmul.mubr.bf16.gmra.mxu0 %v119
  %v224 = vpop.f32.mrf.mxu0
  %v225 = vadd.f32 0.0, %v224
  %v226 = vpop.f32.mrf.mxu0
  %v227 = vpop.f32.mrf.mxu0
  %v228 = vadd.f32 0.0, %v227
  %v229 = vpop.f32.mrf.mxu0
  %230 = vmatprep.mubr.bf16.mxu0 0
  %231 = vmatmul.mubr.bf16.gmra.mxu0 %v120
  %v232 = vpop.f32.mrf.mxu0
  %v233 = vadd.f32 0.0, %v232
  %v234 = vpop.f32.mrf.mxu0
  %v235 = vpop.f32.mrf.mxu0
  %v236 = vadd.f32 0.0, %v235
  %v237 = vpop.f32.mrf.mxu0
  %238 = vmatprep.mubr.bf16.mxu0 0
  %239 = vmatmul.mubr.bf16.gmra.mxu0 %v121
  %v240 = vpop.f32.mrf.mxu0
  %v241 = vadd.f32 0.0, %v240
  %v242 = vpop.f32.mrf.mxu0
  %v243 = vpop.f32.mrf.mxu0
  %v244 = vadd.f32 0.0, %v243
  %v245 = vpop.f32.mrf.mxu0
  %246 = vmatprep.mubr.bf16.mxu0 0
  %247 = vmatmul.mubr.bf16.gmra.mxu0 %v122
  %v248 = vpop.f32.mrf.mxu0
  %v249 = vadd.f32 0.0, %v248
  %v250 = vpop.f32.mrf.mxu0
  %v251 = vpop.f32.mrf.mxu0
  %v252 = vadd.f32 0.0, %v251
  %v253 = vpop.f32.mrf.mxu0
  %254 = vmatprep.mubr.bf16.mxu0 0
  %255 = vmatmul.mubr.bf16.gmra.mxu0 %v123
  %v256 = vpop.f32.mrf.mxu0
  %v257 = vadd.f32 0.0, %v256
  %v258 = vpop.f32.mrf.mxu0
  %v259 = vpop.f32.mrf.mxu0
  %v260 = vadd.f32 0.0, %v259
  %v261 = vpop.f32.mrf.mxu0
  %262 = vmatprep.mubr.bf16.mxu0 0
  %263 = vmatmul.mubr.bf16.gmra.mxu0 %v124
  %v264 = vpop.f32.mrf.mxu0
  %v265 = vadd.f32 0.0, %v264
  %v266 = vpop.f32.mrf.mxu0
  %v267 = vpop.f32.mrf.mxu0
  %v268 = vadd.f32 0.0, %v267
  %v269 = vpop.f32.mrf.mxu0
  %270 = vmatprep.mubr.bf16.mxu0 0
  %271 = vmatmul.mubr.bf16.gmra.mxu0 %v125
  %v272 = vpop.f32.mrf.mxu0
  %v273 = vadd.f32 0.0, %v272
  %v274 = vpop.f32.mrf.mxu0
  %v275 = vpop.f32.mrf.mxu0
  %v276 = vadd.f32 0.0, %v275
  %v277 = vpop.f32.mrf.mxu0
  %278 = vdwg.mxu0
  %v279 = vadd.f32 %v38, %v217
  %v280 = vadd.f32 %v39, %v220
  %v281 = vadd.f32 %v40, %v225
  %v282 = vadd.f32 %v41, %v228
  %v283 = vadd.f32 %v42, %v233
  %v284 = vadd.f32 %v43, %v236
  %v285 = vadd.f32 %v44, %v241
  %v286 = vadd.f32 %v45, %v244
  %v287 = vadd.f32 %v46, %v249
  %v288 = vadd.f32 %v47, %v252
  %v289 = vadd.f32 %v48, %v257
  %v290 = vadd.f32 %v49, %v260
  %v291 = vadd.f32 %v50, %v265
  %v292 = vadd.f32 %v51, %v268
  %v293 = vadd.f32 %v52, %v273
  %v294 = vadd.f32 %v53, %v276
  %295 = vst [vmem:[#allocation2] sm:$0xff] %v279
  %296 = vst [vmem:[#allocation2 + $0x8] sm:$0xff] %v280
  %297 = vst [vmem:[#allocation2 + $0x10] sm:$0xff] %v281
  %298 = vst [vmem:[#allocation2 + $0x18] sm:$0xff] %v282
  %299 = vst [vmem:[#allocation2 + $0x20] sm:$0xff] %v283
  %300 = vst [vmem:[#allocation2 + $0x28] sm:$0xff] %v284
  %301 = vst [vmem:[#allocation2 + $0x30] sm:$0xff] %v285
  %302 = vst [vmem:[#allocation2 + $0x38] sm:$0xff] %v286
  %303 = vst [vmem:[#allocation2 + $0x40] sm:$0xff] %v287
  %304 = vst [vmem:[#allocation2 + $0x48] sm:$0xff] %v288
  %305 = vst [vmem:[#allocation2 + $0x50] sm:$0xff] %v289
  %306 = vst [vmem:[#allocation2 + $0x58] sm:$0xff] %v290
  %307 = vst [vmem:[#allocation2 + $0x60] sm:$0xff] %v291
  %308 = vst [vmem:[#allocation2 + $0x68] sm:$0xff] %v292
  %309 = vst [vmem:[#allocation2 + $0x70] sm:$0xff] %v293
  %310 = vst [vmem:[#allocation2 + $0x78] sm:$0xff] %v294
  // Predicated region
  $region22: #{_matmul_prepped.1} parent=0 // pred_check
    %p311 = pneg %p18
  $region23: #{_matmul_prepped.1} parent=0 // pred_check_branch
    %313 = sbr.rel (%p311) target = $region25
  $region24: #{_matmul_prepped.1} parent=0 // pred_region
    %v314 = vld [vmem:[#allocation2] sm:$0xff]
    %v315 = vld [vmem:[#allocation2 + $0x8] sm:$0xff]
    %v316 = vld [vmem:[#allocation2 + $0x10] sm:$0xff]
    %v317 = vld [vmem:[#allocation2 + $0x18] sm:$0xff]
    %v318 = vld [vmem:[#allocation2 + $0x20] sm:$0xff]
    %v319 = vld [vmem:[#allocation2 + $0x28] sm:$0xff]
    %v320 = vld [vmem:[#allocation2 + $0x30] sm:$0xff]
    %v321 = vld [vmem:[#allocation2 + $0x38] sm:$0xff]
    %v322 = vld [vmem:[#allocation2 + $0x40] sm:$0xff]
    %v323 = vld [vmem:[#allocation2 + $0x48] sm:$0xff]
    %v324 = vld [vmem:[#allocation2 + $0x50] sm:$0xff]
    %v325 = vld [vmem:[#allocation2 + $0x58] sm:$0xff]
    %v326 = vld [vmem:[#allocation2 + $0x60] sm:$0xff]
    %v327 = vld [vmem:[#allocation2 + $0x68] sm:$0xff]
    %v328 = vld [vmem:[#allocation2 + $0x70] sm:$0xff]
    %v329 = vld [vmem:[#allocation2 + $0x78] sm:$0xff]
    %v330 = vld [vmem:[%s2] sm:$0x1]
    %v332 = vlaneseq
    %v333 = vshrl.u32 %v332, 7
    %v334 = vsub.s32 0, %v333
    %v335 = vrot.slane %v330, %v334
    %v337 = vmul.f32 %v314, %v335
    %v338 = vmul.f32 %v315, %v335
    %v339 = vmul.f32 %v316, %v335
    %v340 = vmul.f32 %v317, %v335
    %v341 = vmul.f32 %v318, %v335
    %v342 = vmul.f32 %v319, %v335
    %v343 = vmul.f32 %v320, %v335
    %v344 = vmul.f32 %v321, %v335
    %v345 = vmul.f32 %v322, %v335
    %v346 = vmul.f32 %v323, %v335
    %v347 = vmul.f32 %v324, %v335
    %v348 = vmul.f32 %v325, %v335
    %v349 = vmul.f32 %v326, %v335
    %v350 = vmul.f32 %v327, %v335
    %v351 = vmul.f32 %v328, %v335
    %v352 = vmul.f32 %v329, %v335
    %v353 = vld [vmem:[%s3] sm:$0x1]
    %v355 = vlaneseq
    %v356 = vshrl.u32 %v355, 7
    %v357 = vsub.s32 0, %v356
    %v358 = vrot.slane %v353, %v357
    %v360 = vadd.f32 %v337, %v358
    %v361 = vadd.f32 %v338, %v358
    %v362 = vadd.f32 %v339, %v358
    %v363 = vadd.f32 %v340, %v358
    %v364 = vadd.f32 %v341, %v358
    %v365 = vadd.f32 %v342, %v358
    %v366 = vadd.f32 %v343, %v358
    %v367 = vadd.f32 %v344, %v358
    %v368 = vadd.f32 %v345, %v358
    %v369 = vadd.f32 %v346, %v358
    %v370 = vadd.f32 %v347, %v358
    %v371 = vadd.f32 %v348, %v358
    %v372 = vadd.f32 %v349, %v358
    %v373 = vadd.f32 %v350, %v358
    %v374 = vadd.f32 %v351, %v358
    %v375 = vadd.f32 %v352, %v358
    %v376 = vmax.f32 %v360, 0.0
    %v377 = vmax.f32 %v361, 0.0
    %v378 = vmax.f32 %v362, 0.0
    %v379 = vmax.f32 %v363, 0.0
    %v380 = vmax.f32 %v364, 0.0
    %v381 = vmax.f32 %v365, 0.0
    %v382 = vmax.f32 %v366, 0.0
    %v383 = vmax.f32 %v367, 0.0
    %v384 = vmax.f32 %v368, 0.0
    %v385 = vmax.f32 %v369, 0.0
    %v386 = vmax.f32 %v370, 0.0
    %v387 = vmax.f32 %v371, 0.0
    %v388 = vmax.f32 %v372, 0.0
    %v389 = vmax.f32 %v373, 0.0
    %v390 = vmax.f32 %v374, 0.0
    %v391 = vmax.f32 %v375, 0.0
    %392 = vst [vmem:[%s4] sm:$0xff] %v376
    %393 = vst [vmem:[%s4 + $0x8] sm:$0xff] %v377
    %394 = vst [vmem:[%s4 + $0x10] sm:$0xff] %v378
    %395 = vst [vmem:[%s4 + $0x18] sm:$0xff] %v379
    %396 = vst [vmem:[%s4 + $0x20] sm:$0xff] %v380
    %397 = vst [vmem:[%s4 + $0x28] sm:$0xff] %v381
    %398 = vst [vmem:[%s4 + $0x30] sm:$0xff] %v382
    %399 = vst [vmem:[%s4 + $0x38] sm:$0xff] %v383
    %400 = vst [vmem:[%s4 + $0x40] sm:$0xff] %v384
    %401 = vst [vmem:[%s4 + $0x48] sm:$0xff] %v385
    %402 = vst [vmem:[%s4 + $0x50] sm:$0xff] %v386
    %403 = vst [vmem:[%s4 + $0x58] sm:$0xff] %v387
    %404 = vst [vmem:[%s4 + $0x60] sm:$0xff] %v388
    %405 = vst [vmem:[%s4 + $0x68] sm:$0xff] %v389
    %406 = vst [vmem:[%s4 + $0x70] sm:$0xff] %v390
    %407 = vst [vmem:[%s4 + $0x78] sm:$0xff] %v391
  $region25: #{_matmul_prepped.1} parent=0 // pred_fallthru
    _
  // Predicated region
  $region26: #{_matmul_prepped.1} parent=0 // pred_check
    _
  $region27: #{_matmul_prepped.1} parent=0 // pred_check_branch
    %409 = sbr.rel (0) target = $region29
  $region28: #{_matmul_prepped.1} parent=0 // pred_region
    _
  $region29: #{_matmul_prepped.1} parent=0 // pred_fallthru
    _
  // Predicated region
  $region30: #{_matmul_prepped.1} parent=0 // pred_check
    _
  $region31: #{_matmul_prepped.1} parent=0 // pred_check_branch
    %411 = sbr.rel (0) target = $region33
  $region32: #{_matmul_prepped.1} parent=0 // pred_region
    _
  $region33: #{_matmul_prepped.1} parent=0 // pred_fallthru
    _

</llo_original>
